<compile_context>
chip_gen: v7x
topology: tpu7x:2x2x1
jax: 0.10.0
libtpu: 0.0.40
codegen_flags: <defaults>
</compile_context>

<pallas_src>
import jax
import jax.numpy as jnp
from jax.experimental import pallas as pl
from jax.experimental.pallas import tpu as pltpu

D_IN = 1024     # fingerprint width  (mol_fp in_features)
D_MODEL = 200   # model width        (mol_fp out_features)
D_PAD = 256     # lane-padded model width (multiple of 128)
TM_MAX = 1024   # max batch tile (per review: 512-1024 hits ~85%+ of HBM roofline)
LANE = 128


def _round_up(x, m):
    return (x + m - 1) // m * m


def _choose_tm(n, tm_max=TM_MAX):
    """Batch tile: multiple of 32 (int8 sublane packing), <= tm_max rows,
    >= 2 grid steps whenever the batch allows it (v7x dual TensorCore),
    and sized to minimize last-tile padding."""
    n32 = _round_up(max(n, 1), 32)
    if n32 <= 32:
        return 32
    steps = max(2, -(-n32 // tm_max))           # at least 2 grid steps
    return _round_up(-(-n32 // steps), 32)


def _pad_rows(a, n_pad):
    n = a.shape[0]
    if n_pad == n:
        return a
    pad = [(0, n_pad - n)] + [(0, 0)] * (a.ndim - 1)
    return jnp.pad(a, pad)


# ----------------------------------------------------------------------------
# Fused Pallas kernel: mol_fp Linear (MXU) + compound/protein length masks
#   y     = bf16(x_int8) @ W_bf16 + b        (TM, 256), f32 accumulation/store
#   cmask = (iota_j < atom_num[i])           (TM, Lc_pad) bf16
#   pmask = (iota_j < protein_num[i])        (TM, Lp_pad) bf16
# ----------------------------------------------------------------------------
def _fused_kernel(x_ref, w_ref, b_ref, alen_ref, plen_ref,
                  y_ref, cmask_ref, pmask_ref):
    x = x_ref[...].astype(jnp.bfloat16)          # int8 -> bf16 (exact for {0,1})
    acc = jnp.dot(x, w_ref[...], preferred_element_type=jnp.float32)
    y_ref[...] = (acc + b_ref[...]).astype(y_ref.dtype)

    c_col = jax.lax.broadcasted_iota(jnp.int32, cmask_ref.shape, 1)
    cmask_ref[...] = (c_col < alen_ref[...]).astype(cmask_ref.dtype)

    p_col = jax.lax.broadcasted_iota(jnp.int32, pmask_ref.shape, 1)
    pmask_ref[...] = (p_col < plen_ref[...]).astype(pmask_ref.dtype)


def mol_fp_and_masks(x, atom_num, protein_num, c_len, p_len, params):
    """x: (N, 1024) fingerprint -> (N, 200) f32 projection + (N,Lc)/(N,Lp) masks."""
    n = x.shape[0]
    tm = _choose_tm(n)
    n_pad = _round_up(n, tm)
    c_pad = _round_up(c_len, LANE)               # lane-dense mask outputs
    p_pad = _round_up(p_len, LANE)

    # int8 fingerprints (exact for binary fingerprints); cast+pad fuse under jit.
    x_p = _pad_rows(x.astype(jnp.int8), n_pad)                         # (N_pad, 1024)
    alen = _pad_rows(atom_num.astype(jnp.int32).reshape(n, 1), n_pad)  # (N_pad, 1)
    plen = _pad_rows(protein_num.astype(jnp.int32).reshape(n, 1), n_pad)
    w = params["mol_fp_w_t"]                      # (1024, 256) bf16, zero-padded cols
    b = params["mol_fp_b"].reshape(1, D_PAD)      # (1, 256) f32

    y, c_mask, p_mask = pl.pallas_call(
        _fused_kernel,
        out_shape=(
            jax.ShapeDtypeStruct((n_pad, D_PAD), jnp.float32),
            jax.ShapeDtypeStruct((n_pad, c_pad), jnp.bfloat16),
            jax.ShapeDtypeStruct((n_pad, p_pad), jnp.bfloat16),
        ),
        grid=(n_pad // tm,),
        in_specs=[
            pl.BlockSpec((tm, D_IN), lambda i: (i, 0)),     # int8 x tile (pipelined)
            pl.BlockSpec((D_IN, D_PAD), lambda i: (0, 0)),  # W resident in VMEM
            pl.BlockSpec((1, D_PAD), lambda i: (0, 0)),     # bias resident
            pl.BlockSpec((tm, 1), lambda i: (i, 0)),        # atom_num tile (int32)
            pl.BlockSpec((tm, 1), lambda i: (i, 0)),        # protein_num tile
        ],
        out_specs=(
            pl.BlockSpec((tm, D_PAD), lambda i: (i, 0)),    # lane-dense 256-wide y
            pl.BlockSpec((tm, c_pad), lambda i: (i, 0)),    # lane-dense bf16 masks
            pl.BlockSpec((tm, p_pad), lambda i: (i, 0)),
        ),
        compiler_params=pltpu.CompilerParams(
            dimension_semantics=("parallel",),
            vmem_limit_bytes=32 * 1024 * 1024),
    )(x_p, w, b, alen, plen)

    # Keep the [:n] slices: padded y rows hold the bias and padded mask rows are 0.
    return y[:n, :D_MODEL], c_mask[:n, :c_len], p_mask[:n, :p_len]


def make_params(w_t_200, b_200):
    """Pre-transposed (1024,200) weight / (200,) bias -> lane-padded kernel params."""
    w_pad = jnp.zeros((D_IN, D_PAD), jnp.float32).at[:, :D_MODEL].set(w_t_200)
    b_pad = jnp.zeros((D_PAD,), jnp.float32).at[:D_MODEL].set(b_200)
    return {"mol_fp_w_t": w_pad.astype(jnp.bfloat16), "mol_fp_b": b_pad}


# ----------------------------------------------------------------------------
# Predictor forward (jitted glue around the Pallas kernel)
# ----------------------------------------------------------------------------
@jax.jit
def predictor_forward(drug_cnn, drug_gnn, data_mol_fp, enc_src,
                      atom_num, protein_num, params):
    # TODO(synk): DCNN/DGNN/encoder/decoder are externally injected submodules
    # with no definition in model.py; their outputs (drug_cnn, drug_gnn,
    # enc_src) are taken as inputs and the final decoder call is omitted —
    # this function returns exactly the tensors the decoder would receive.

    # drug_cnn = self.DCNN(...).to(torch.long) re-promoted to float by the
    # concat with float drug_gnn  ->  truncate toward zero (fuses under jit).
    drug_cnn = jnp.trunc(drug_cnn)

    compound_max_len = drug_cnn.shape[1] + drug_gnn.shape[1] + 1
    protein_max_len = enc_src.shape[1]

    # mol_fp Linear + make_masks fused into one Pallas call.
    fp, c_mask, p_mask = mol_fp_and_masks(
        data_mol_fp, atom_num, protein_num,
        compound_max_len, protein_max_len, params)

    # enc_trg = cat((drug_cnn, drug_gnn), 1); cat((enc_trg, mol_fp), 1)
    enc_trg = jnp.concatenate([drug_cnn, drug_gnn, fp[:, None, :]], axis=1)

    # make_masks semantics identical to the torch reference: mask covers
    # positions < atom_num / < protein_num of the enc_trg / enc_src lengths.
    compound_mask = c_mask.astype(jnp.float32)[:, None, :, None]   # (N,1,Lc,1)
    protein_mask = p_mask.astype(jnp.float32)[:, None, None, :]    # (N,1,1,Lp)

    # out = self.decoder(enc_trg, enc_src, compound_mask, protein_mask)
    # (decoder is external -> omitted, see TODO above)
    return enc_trg, enc_src, compound_mask, protein_mask


# ----------------------------------------------------------------------------
# Deterministic setup + smoke test
# ----------------------------------------------------------------------------
if __name__ == "__main__":
    key = jax.random.PRNGKey(0)
    k_w, k_b, k_fp, k_cnn, k_gnn, k_src = jax.random.split(key, 6)

    N = 2            # batch
    L_CNN = 4        # DCNN output sequence length (placeholder)
    L_GNN = 4        # DGNN output sequence length (placeholder)
    L_PRO = 16       # encoder output sequence length (placeholder)

    # mol_fp Linear parameters (emb1/emb2/emb3 are declared but unused in forward).
    w_t_200 = (jax.random.normal(k_w, (D_IN, D_MODEL), jnp.float32)
               * (1.0 / jnp.sqrt(D_IN)))
    b_200 = jax.random.normal(k_b, (D_MODEL,), jnp.float32) * 0.01
    params = make_params(w_t_200, b_200)

    # Inputs (outputs of external submodules synthesized deterministically)
    data_mol_fp = (jax.random.uniform(k_fp, (N, D_IN)) > 0.5).astype(jnp.float32)
    drug_cnn = jax.random.normal(k_cnn, (N, L_CNN, D_MODEL), jnp.float32) * 3.0
    drug_gnn = jax.random.normal(k_gnn, (N, L_GNN, D_MODEL), jnp.float32)
    enc_src = jax.random.normal(k_src, (N, L_PRO, D_MODEL), jnp.float32)
    atom_num = jnp.array([5, 7], dtype=jnp.int32)       # per-graph atom counts
    protein_num = jnp.array([10, 14], dtype=jnp.int32)  # per-graph residue counts

    enc_trg, enc_src_out, c_mask, p_mask = predictor_forward(
        drug_cnn, drug_gnn, data_mol_fp, enc_src, atom_num, protein_num, params)
    jax.block_until_ready((enc_trg, enc_src_out, c_mask, p_mask))

    # Sanity checks against the reference semantics
    L_TRG = L_CNN + L_GNN + 1
    assert enc_trg.shape == (N, L_TRG, D_MODEL)
    assert c_mask.shape == (N, 1, L_TRG, 1)
    assert p_mask.shape == (N, 1, 1, L_PRO)

    # Reference matmul with the same bf16 weight precision (x is binary -> exact).
    ref_fp = jnp.dot(data_mol_fp.astype(jnp.bfloat16),
                     w_t_200.astype(jnp.bfloat16),
                     preferred_element_type=jnp.float32) + b_200
    assert jnp.allclose(enc_trg[:, -1, :], ref_fp, atol=1e-2, rtol=1e-2)

    assert int(c_mask[0].sum()) == min(int(atom_num[0]), L_TRG)
    assert int(c_mask[1].sum()) == min(int(atom_num[1]), L_TRG)
    assert int(p_mask[0].sum()) == int(protein_num[0])
    assert int(p_mask[1].sum()) == int(protein_num[1])

    print("KERNEL_OK")
</pallas_src>

<mosaic_0001>
module attributes {stable_mosaic.version = 11 : i64} {
  func.func @_fused_kernel(%arg0: i32, %arg1: memref<32x1024xi8, #tpu.memory_space<vmem>>, %arg2: memref<1024x256xbf16, #tpu.memory_space<vmem>>, %arg3: memref<1x256xf32, #tpu.memory_space<vmem>>, %arg4: memref<32x1xi32, #tpu.memory_space<vmem>>, %arg5: memref<32x1xi32, #tpu.memory_space<vmem>>, %arg6: memref<32x256xf32, #tpu.memory_space<vmem>>, %arg7: memref<32x128xbf16, #tpu.memory_space<vmem>>, %arg8: memref<32x128xbf16, #tpu.memory_space<vmem>>) attributes {dimension_semantics = [#tpu.dimension_semantics<parallel>], iteration_bounds = array<i64: 1>, scalar_prefetch = 0 : i64, scratch_operands = 0 : i64, tpu.core_type = #tpu.core_type<tc>, window_params = [{transform_indices = @transform_0, window_bounds = array<i64: 32, 1024>}, {pipeline_mode = #tpu.pipeline_mode<synchronous>, transform_indices = @transform_1, window_bounds = array<i64: 1024, 256>}, {pipeline_mode = #tpu.pipeline_mode<synchronous>, transform_indices = @transform_2, window_bounds = array<i64: 1, 256>}, {transform_indices = @transform_3, window_bounds = array<i64: 32, 1>}, {transform_indices = @transform_4, window_bounds = array<i64: 32, 1>}, {transform_indices = @transform_5, window_bounds = array<i64: 32, 256>}, {transform_indices = @transform_6, window_bounds = array<i64: 32, 128>}, {transform_indices = @transform_7, window_bounds = array<i64: 32, 128>}]} {
    %c0 = arith.constant 0 : index
    %c0_0 = arith.constant 0 : index
    %0 = vector.load %arg1[%c0, %c0_0] : memref<32x1024xi8, #tpu.memory_space<vmem>>, vector<32x1024xi8>
    %1 = arith.sitofp %0 : vector<32x1024xi8> to vector<32x1024xbf16>
    %c0_1 = arith.constant 0 : index
    %c0_2 = arith.constant 0 : index
    %2 = vector.load %arg2[%c0_1, %c0_2] : memref<1024x256xbf16, #tpu.memory_space<vmem>>, vector<1024x256xbf16>
    %cst = arith.constant dense<0.000000e+00> : vector<32x256xf32>
    %3 = tpu.matmul %1, %2, %cst {dimension_numbers = #tpu.dot_dimension_numbers<[1], [0], [0], [1], [0, 0, 1, 1], [], []>} : vector<32x1024xbf16>, vector<1024x256xbf16>, vector<32x256xf32> -> vector<32x256xf32>
    %c0_3 = arith.constant 0 : index
    %c0_4 = arith.constant 0 : index
    %4 = vector.load %arg3[%c0_3, %c0_4] : memref<1x256xf32, #tpu.memory_space<vmem>>, vector<1x256xf32>
    %5 = vector.broadcast %4 : vector<1x256xf32> to vector<32x256xf32>
    %6 = arith.addf %3, %5 : vector<32x256xf32>
    %c0_5 = arith.constant 0 : index
    %c0_6 = arith.constant 0 : index
    %7 = vector.load %arg6[%c0_5, %c0_6] : memref<32x256xf32, #tpu.memory_space<vmem>>, vector<32x256xf32>
    tpu.vector_store %arg6[%c0_5, %c0_6], %6 {strides = array<i32>} : memref<32x256xf32, #tpu.memory_space<vmem>>, vector<32x256xf32>,
    %8 = tpu.iota {dimensions = array<i32: 1>} : vector<32x128xi32>
    %c0_7 = arith.constant 0 : index
    %c0_8 = arith.constant 0 : index
    %9 = vector.load %arg4[%c0_7, %c0_8] : memref<32x1xi32, #tpu.memory_space<vmem>>, vector<32x1xi32>
    %10 = vector.broadcast %9 : vector<32x1xi32> to vector<32x128xi32>
    %11 = arith.cmpi slt, %8, %10 : vector<32x128xi32>
    %12 = arith.extui %11 : vector<32x128xi1> to vector<32x128xi32>
    %13 = arith.sitofp %12 : vector<32x128xi32> to vector<32x128xf32>
    %14 = arith.truncf %13 : vector<32x128xf32> to vector<32x128xbf16>
    %c0_9 = arith.constant 0 : index
    %c0_10 = arith.constant 0 : index
    %15 = vector.load %arg7[%c0_9, %c0_10] : memref<32x128xbf16, #tpu.memory_space<vmem>>, vector<32x128xbf16>
    tpu.vector_store %arg7[%c0_9, %c0_10], %14 {strides = array<i32>} : memref<32x128xbf16, #tpu.memory_space<vmem>>, vector<32x128xbf16>,
    %16 = tpu.iota {dimensions = array<i32: 1>} : vector<32x128xi32>
    %c0_11 = arith.constant 0 : index
    %c0_12 = arith.constant 0 : index
    %17 = vector.load %arg5[%c0_11, %c0_12] : memref<32x1xi32, #tpu.memory_space<vmem>>, vector<32x1xi32>
    %18 = vector.broadcast %17 : vector<32x1xi32> to vector<32x128xi32>
    %19 = arith.cmpi slt, %16, %18 : vector<32x128xi32>
    %20 = arith.extui %19 : vector<32x128xi1> to vector<32x128xi32>
    %21 = arith.sitofp %20 : vector<32x128xi32> to vector<32x128xf32>
    %22 = arith.truncf %21 : vector<32x128xf32> to vector<32x128xbf16>
    %c0_13 = arith.constant 0 : index
    %c0_14 = arith.constant 0 : index
    %23 = vector.load %arg8[%c0_13, %c0_14] : memref<32x128xbf16, #tpu.memory_space<vmem>>, vector<32x128xbf16>
    tpu.vector_store %arg8[%c0_13, %c0_14], %22 {strides = array<i32>} : memref<32x128xbf16, #tpu.memory_space<vmem>>, vector<32x128xbf16>,
    return
  }
  func.func @transform_0(%arg0: i32) -> (i32, i32) {
    %c0_i32 = arith.constant 0 : i32
    %c0_i32_0 = arith.constant 0 : i32
    return %arg0, %c0_i32 : i32, i32
  }
  func.func @transform_1(%arg0: i32) -> (i32, i32) {
    %c0_i32 = arith.constant 0 : i32
    %c0_i32_0 = arith.constant 0 : i32
    %c0_i32_1 = arith.constant 0 : i32
    return %c0_i32, %c0_i32_0 : i32, i32
  }
  func.func @transform_2(%arg0: i32) -> (i32, i32) {
    %c0_i32 = arith.constant 0 : i32
    %c0_i32_0 = arith.constant 0 : i32
    %c0_i32_1 = arith.constant 0 : i32
    return %c0_i32, %c0_i32_0 : i32, i32
  }
  func.func @transform_3(%arg0: i32) -> (i32, i32) {
    %c0_i32 = arith.constant 0 : i32
    %c0_i32_0 = arith.constant 0 : i32
    return %arg0, %c0_i32 : i32, i32
  }
  func.func @transform_4(%arg0: i32) -> (i32, i32) {
    %c0_i32 = arith.constant 0 : i32
    %c0_i32_0 = arith.constant 0 : i32
    return %arg0, %c0_i32 : i32, i32
  }
  func.func @transform_5(%arg0: i32) -> (i32, i32) {
    %c0_i32 = arith.constant 0 : i32
    %c0_i32_0 = arith.constant 0 : i32
    return %arg0, %c0_i32 : i32, i32
  }
  func.func @transform_6(%arg0: i32) -> (i32, i32) {
    %c0_i32 = arith.constant 0 : i32
    %c0_i32_0 = arith.constant 0 : i32
    return %arg0, %c0_i32 : i32, i32
  }
  func.func @transform_7(%arg0: i32) -> (i32, i32) {
    %c0_i32 = arith.constant 0 : i32
    %c0_i32_0 = arith.constant 0 : i32
    return %arg0, %c0_i32 : i32, i32
  }
}

</mosaic_0001>

<llo_original>
// kernel: predictor_forward.1
$region0: #{predictor_forward.1}
  #allocation0 [shape = 'u32[]', space=smem, size = 0x4, offset = 0x4, fixed_abs, tag = 'smem constant byte address 0x4 - core index']
  #allocation1 [shape = 'u32[144,128]{1,0:T(1,128)}', space=vmem, size = 0x12000, scoped, tag = 'internal scratch']
  %s0 = inlined_call_operand.vmem [shape: s8[32,1024], index: 0, kind: input, shape index: {}]
  %s1 = inlined_call_operand.hbm [shape: bf16[1024,256], index: 1, kind: input, shape index: {}]
  %s2 = inlined_call_operand.vmem [shape: f32[1,256], index: 2, kind: input, shape index: {}]
  %s3 = inlined_call_operand.vmem [shape: s32[32,1], index: 3, kind: input, shape index: {}]
  %s4 = inlined_call_operand.vmem [shape: s32[32,1], index: 4, kind: input, shape index: {}]
  %s5 = inlined_call_operand.vmem [shape: f32[32,256], index: 5, kind: output, shape index: {0}]
  %s6 = inlined_call_operand.vmem [shape: bf16[32,128], index: 6, kind: output, shape index: {1}]
  %s7 = inlined_call_operand.vmem [shape: bf16[32,128], index: 7, kind: output, shape index: {2}]
  %8 = xla_tuple %s5, %s6, %s7
  %s9 = sld [smem:[#allocation0]]
  $region50: #{predictor_forward.1} parent=0
    _
  %s11 = ssub.s32 1, %s9
  %s12 = scalar_select 0, %s11, %s9
  $region1: #{predictor_forward.1} parent=0
    #allocation2 [shape = 'u8[524288]{0}', space=vmem, size = 0x80000, scoped, tag = 'input window, operand 1, single buffered']
    #allocation3 [shape = 's32[1]{0}', space=sflag, size = 0x4, scoped, tag = 'scoped memory for predictor_forward.1']
    %13 = vsyncpa [#allocation3], 0
    // Predicated region
    $region2: #{predictor_forward.1} parent=1 // pred_check
      _
    $region3: #{predictor_forward.1} parent=1 // pred_check_branch
      %15 = sbr.rel (0) target = $region5
    $region4: #{predictor_forward.1} parent=1 // pred_region
      _
    $region5: #{predictor_forward.1} parent=1 // pred_fallthru
      _
    // Predicated region
    $region6: #{predictor_forward.1} parent=1 // pred_check
      _
    $region7: #{predictor_forward.1} parent=1 // pred_check_branch
      %17 = sbr.rel (0) target = $region9
    $region8: #{predictor_forward.1} parent=1 // pred_region
      %s19 = ssub.s32 16384, 16384
      %20 = vsyncadd [#allocation3], %s19
      %s21 = sshll.u32 [#allocation2], 4
      %s22 = int_to_ptr.vmem [resolvable:$true] %s21
      %27 = dma.hbm_to_vmem [thread:$0]  %s1, 16384, %s22, [#allocation3], 128, 128, 8
    $region9: #{predictor_forward.1} parent=1 // pred_fallthru
      _
    // Predicated region
    $region10: #{predictor_forward.1} parent=1 // pred_check
      _
    $region11: #{predictor_forward.1} parent=1 // pred_check_branch
      %29 = sbr.rel (0) target = $region13
    $region12: #{predictor_forward.1} parent=1 // pred_region
      _
    $region13: #{predictor_forward.1} parent=1 // pred_fallthru
      _
    // Predicated region
    $region14: #{predictor_forward.1} parent=1 // pred_check
      _
    $region15: #{predictor_forward.1} parent=1 // pred_check_branch
      %31 = sbr.rel (0) target = $region17
    $region16: #{predictor_forward.1} parent=1 // pred_region
      _
    $region17: #{predictor_forward.1} parent=1 // pred_fallthru
      _
    // Predicated region
    $region18: #{predictor_forward.1} parent=1 // pred_check
      _
    $region19: #{predictor_forward.1} parent=1 // pred_check_branch
      %33 = sbr.rel (0) target = $region21
    $region20: #{predictor_forward.1} parent=1 // pred_region
      _
    $region21: #{predictor_forward.1} parent=1 // pred_fallthru
      _
    // Predicated region
    $region22: #{predictor_forward.1} parent=1 // pred_check
      _
    $region23: #{predictor_forward.1} parent=1 // pred_check_branch
      %35 = sbr.rel (0) target = $region25
    $region24: #{predictor_forward.1} parent=1 // pred_region
      %36 = dma.done [#allocation3], 16384
    $region25: #{predictor_forward.1} parent=1 // pred_fallthru
      _
    %v37 = vld [vmem:[%s0] sm:$0xff]
    %v38 = vld [vmem:[%s0 + $0x8] sm:$0xff]
    %v39 = vld [vmem:[%s0 + $0x10] sm:$0xff]
    %v40 = vld [vmem:[%s0 + $0x18] sm:$0xff]
    %v41 = vld [vmem:[%s0 + $0x20] sm:$0xff]
    %v42 = vld [vmem:[%s0 + $0x28] sm:$0xff]
    %v43 = vld [vmem:[%s0 + $0x30] sm:$0xff]
    %v44 = vld [vmem:[%s0 + $0x38] sm:$0xff]
    %v45 = vunpack.c.l.s8.bf16 %v37
    %v46 = vunpack.c.l.s8.bf16 %v38
    %v47 = vunpack.c.l.s8.bf16 %v39
    %v48 = vunpack.c.l.s8.bf16 %v40
    %v49 = vunpack.c.l.s8.bf16 %v41
    %v50 = vunpack.c.l.s8.bf16 %v42
    %v51 = vunpack.c.l.s8.bf16 %v43
    %v52 = vunpack.c.l.s8.bf16 %v44
    %v53 = vunpack.c.h.s8.bf16 %v37
    %v54 = vunpack.c.h.s8.bf16 %v38
    %v55 = vunpack.c.h.s8.bf16 %v39
    %v56 = vunpack.c.h.s8.bf16 %v40
    %v57 = vunpack.c.h.s8.bf16 %v41
    %v58 = vunpack.c.h.s8.bf16 %v42
    %v59 = vunpack.c.h.s8.bf16 %v43
    %v60 = vunpack.c.h.s8.bf16 %v44
    %v61 = vld [vmem:[#allocation2] sm:$0xff]
    %v62 = vld [vmem:[#allocation2 + $0x8] sm:$0xff]
    %v63 = vld [vmem:[#allocation2 + $0x10] sm:$0xff]
    %v64 = vld [vmem:[#allocation2 + $0x18] sm:$0xff]
    %v65 = vld [vmem:[#allocation2 + $0x20] sm:$0xff]
    %v66 = vld [vmem:[#allocation2 + $0x28] sm:$0xff]
    %v67 = vld [vmem:[#allocation2 + $0x30] sm:$0xff]
    %v68 = vld [vmem:[#allocation2 + $0x38] sm:$0xff]
    %v69 = vld [vmem:[#allocation2 + $0x40] sm:$0xff]
    %v70 = vld [vmem:[#allocation2 + $0x48] sm:$0xff]
    %v71 = vld [vmem:[#allocation2 + $0x50] sm:$0xff]
    %v72 = vld [vmem:[#allocation2 + $0x58] sm:$0xff]
    %v73 = vld [vmem:[#allocation2 + $0x60] sm:$0xff]
    %v74 = vld [vmem:[#allocation2 + $0x68] sm:$0xff]
    %v75 = vld [vmem:[#allocation2 + $0x70] sm:$0xff]
    %v76 = vld [vmem:[#allocation2 + $0x78] sm:$0xff]
    %v77 = vld [vmem:[#allocation2 + $0x80] sm:$0xff]
    %v78 = vld [vmem:[#allocation2 + $0x88] sm:$0xff]
    %v79 = vld [vmem:[#allocation2 + $0x90] sm:$0xff]
    %v80 = vld [vmem:[#allocation2 + $0x98] sm:$0xff]
    %v81 = vld [vmem:[#allocation2 + $0xa0] sm:$0xff]
    %v82 = vld [vmem:[#allocation2 + $0xa8] sm:$0xff]
    %v83 = vld [vmem:[#allocation2 + $0xb0] sm:$0xff]
    %v84 = vld [vmem:[#allocation2 + $0xb8] sm:$0xff]
    %v85 = vld [vmem:[#allocation2 + $0xc0] sm:$0xff]
    %v86 = vld [vmem:[#allocation2 + $0xc8] sm:$0xff]
    %v87 = vld [vmem:[#allocation2 + $0xd0] sm:$0xff]
    %v88 = vld [vmem:[#allocation2 + $0xd8] sm:$0xff]
    %v89 = vld [vmem:[#allocation2 + $0xe0] sm:$0xff]
    %v90 = vld [vmem:[#allocation2 + $0xe8] sm:$0xff]
    %v91 = vld [vmem:[#allocation2 + $0xf0] sm:$0xff]
    %v92 = vld [vmem:[#allocation2 + $0xf8] sm:$0xff]
    %v93 = vld [vmem:[#allocation2 + $0x100] sm:$0xff]
    %v94 = vld [vmem:[#allocation2 + $0x108] sm:$0xff]
    %v95 = vld [vmem:[#allocation2 + $0x110] sm:$0xff]
    %v96 = vld [vmem:[#allocation2 + $0x118] sm:$0xff]
    %v97 = vld [vmem:[#allocation2 + $0x120] sm:$0xff]
    %v98 = vld [vmem:[#allocation2 + $0x128] sm:$0xff]
    %v99 = vld [vmem:[#allocation2 + $0x130] sm:$0xff]
    %v100 = vld [vmem:[#allocation2 + $0x138] sm:$0xff]
    %v101 = vld [vmem:[#allocation2 + $0x140] sm:$0xff]
    %v102 = vld [vmem:[#allocation2 + $0x148] sm:$0xff]
    %v103 = vld [vmem:[#allocation2 + $0x150] sm:$0xff]
    %v104 = vld [vmem:[#allocation2 + $0x158] sm:$0xff]
    %v105 = vld [vmem:[#allocation2 + $0x160] sm:$0xff]
    %v106 = vld [vmem:[#allocation2 + $0x168] sm:$0xff]
    %v107 = vld [vmem:[#allocation2 + $0x170] sm:$0xff]
    %v108 = vld [vmem:[#allocation2 + $0x178] sm:$0xff]
    %v109 = vld [vmem:[#allocation2 + $0x180] sm:$0xff]
    %v110 = vld [vmem:[#allocation2 + $0x188] sm:$0xff]
    %v111 = vld [vmem:[#allocation2 + $0x190] sm:$0xff]
    %v112 = vld [vmem:[#allocation2 + $0x198] sm:$0xff]
    %v113 = vld [vmem:[#allocation2 + $0x1a0] sm:$0xff]
    %v114 = vld [vmem:[#allocation2 + $0x1a8] sm:$0xff]
    %v115 = vld [vmem:[#allocation2 + $0x1b0] sm:$0xff]
    %v116 = vld [vmem:[#allocation2 + $0x1b8] sm:$0xff]
    %v117 = vld [vmem:[#allocation2 + $0x1c0] sm:$0xff]
    %v118 = vld [vmem:[#allocation2 + $0x1c8] sm:$0xff]
    %v119 = vld [vmem:[#allocation2 + $0x1d0] sm:$0xff]
    %v120 = vld [vmem:[#allocation2 + $0x1d8] sm:$0xff]
    %v121 = vld [vmem:[#allocation2 + $0x1e0] sm:$0xff]
    %v122 = vld [vmem:[#allocation2 + $0x1e8] sm:$0xff]
    %v123 = vld [vmem:[#allocation2 + $0x1f0] sm:$0xff]
    %v124 = vld [vmem:[#allocation2 + $0x1f8] sm:$0xff]
    %v125 = vld [vmem:[#allocation2 + $0x200] sm:$0xff]
    %v126 = vld [vmem:[#allocation2 + $0x208] sm:$0xff]
    %v127 = vld [vmem:[#allocation2 + $0x210] sm:$0xff]
    %v128 = vld [vmem:[#allocation2 + $0x218] sm:$0xff]
    %v129 = vld [vmem:[#allocation2 + $0x220] sm:$0xff]
    %v130 = vld [vmem:[#allocation2 + $0x228] sm:$0xff]
    %v131 = vld [vmem:[#allocation2 + $0x230] sm:$0xff]
    %v132 = vld [vmem:[#allocation2 + $0x238] sm:$0xff]
    %v133 = vld [vmem:[#allocation2 + $0x240] sm:$0xff]
    %v134 = vld [vmem:[#allocation2 + $0x248] sm:$0xff]
    %v135 = vld [vmem:[#allocation2 + $0x250] sm:$0xff]
    %v136 = vld [vmem:[#allocation2 + $0x258] sm:$0xff]
    %v137 = vld [vmem:[#allocation2 + $0x260] sm:$0xff]
    %v138 = vld [vmem:[#allocation2 + $0x268] sm:$0xff]
    %v139 = vld [vmem:[#allocation2 + $0x270] sm:$0xff]
    %v140 = vld [vmem:[#allocation2 + $0x278] sm:$0xff]
    %v141 = vld [vmem:[#allocation2 + $0x280] sm:$0xff]
    %v142 = vld [vmem:[#allocation2 + $0x288] sm:$0xff]
    %v143 = vld [vmem:[#allocation2 + $0x290] sm:$0xff]
    %v144 = vld [vmem:[#allocation2 + $0x298] sm:$0xff]
    %v145 = vld [vmem:[#allocation2 + $0x2a0] sm:$0xff]
    %v146 = vld [vmem:[#allocation2 + $0x2a8] sm:$0xff]
    %v147 = vld [vmem:[#allocation2 + $0x2b0] sm:$0xff]
    %v148 = vld [vmem:[#allocation2 + $0x2b8] sm:$0xff]
    %v149 = vld [vmem:[#allocation2 + $0x2c0] sm:$0xff]
    %v150 = vld [vmem:[#allocation2 + $0x2c8] sm:$0xff]
    %v151 = vld [vmem:[#allocation2 + $0x2d0] sm:$0xff]
    %v152 = vld [vmem:[#allocation2 + $0x2d8] sm:$0xff]
    %v153 = vld [vmem:[#allocation2 + $0x2e0] sm:$0xff]
    %v154 = vld [vmem:[#allocation2 + $0x2e8] sm:$0xff]
    %v155 = vld [vmem:[#allocation2 + $0x2f0] sm:$0xff]
    %v156 = vld [vmem:[#allocation2 + $0x2f8] sm:$0xff]
    %v157 = vld [vmem:[#allocation2 + $0x300] sm:$0xff]
    %v158 = vld [vmem:[#allocation2 + $0x308] sm:$0xff]
    %v159 = vld [vmem:[#allocation2 + $0x310] sm:$0xff]
    %v160 = vld [vmem:[#allocation2 + $0x318] sm:$0xff]
    %v161 = vld [vmem:[#allocation2 + $0x320] sm:$0xff]
    %v162 = vld [vmem:[#allocation2 + $0x328] sm:$0xff]
    %v163 = vld [vmem:[#allocation2 + $0x330] sm:$0xff]
    %v164 = vld [vmem:[#allocation2 + $0x338] sm:$0xff]
    %v165 = vld [vmem:[#allocation2 + $0x340] sm:$0xff]
    %v166 = vld [vmem:[#allocation2 + $0x348] sm:$0xff]
    %v167 = vld [vmem:[#allocation2 + $0x350] sm:$0xff]
    %v168 = vld [vmem:[#allocation2 + $0x358] sm:$0xff]
    %v169 = vld [vmem:[#allocation2 + $0x360] sm:$0xff]
    %v170 = vld [vmem:[#allocation2 + $0x368] sm:$0xff]
    %v171 = vld [vmem:[#allocation2 + $0x370] sm:$0xff]
    %v172 = vld [vmem:[#allocation2 + $0x378] sm:$0xff]
    %v173 = vld [vmem:[#allocation2 + $0x380] sm:$0xff]
    %v174 = vld [vmem:[#allocation2 + $0x388] sm:$0xff]
    %v175 = vld [vmem:[#allocation2 + $0x390] sm:$0xff]
    %v176 = vld [vmem:[#allocation2 + $0x398] sm:$0xff]
    %v177 = vld [vmem:[#allocation2 + $0x3a0] sm:$0xff]
    %v178 = vld [vmem:[#allocation2 + $0x3a8] sm:$0xff]
    %v179 = vld [vmem:[#allocation2 + $0x3b0] sm:$0xff]
    %v180 = vld [vmem:[#allocation2 + $0x3b8] sm:$0xff]
    %v181 = vld [vmem:[#allocation2 + $0x3c0] sm:$0xff]
    %v182 = vld [vmem:[#allocation2 + $0x3c8] sm:$0xff]
    %v183 = vld [vmem:[#allocation2 + $0x3d0] sm:$0xff]
    %v184 = vld [vmem:[#allocation2 + $0x3d8] sm:$0xff]
    %v185 = vld [vmem:[#allocation2 + $0x3e0] sm:$0xff]
    %v186 = vld [vmem:[#allocation2 + $0x3e8] sm:$0xff]
    %v187 = vld [vmem:[#allocation2 + $0x3f0] sm:$0xff]
    %v188 = vld [vmem:[#allocation2 + $0x3f8] sm:$0xff]
    %v189 = vld [vmem:[%s2] sm:$0x3]
    %v191 = vlaneseq
    %v192 = vshrl.u32 %v191, 7
    %v193 = vsub.s32 0, %v192
    %v194 = vrot.slane %v189, %v193
    %v195 = vlaneseq
    %v196 = vshrl.u32 %v195, 7
    %v197 = vsub.s32 1, %v196
    %v198 = vrot.slane %v189, %v197
    %v329 = vunpack.c.l.b16 %v61
    %v330 = vunpack.c.h.b16 %v61
    %v331 = vunpack.c.l.b16 %v62
    %v332 = vunpack.c.h.b16 %v62
    %v333 = vunpack.c.l.b16 %v63
    %v334 = vunpack.c.h.b16 %v63
    %v335 = vunpack.c.l.b16 %v64
    %v336 = vunpack.c.h.b16 %v64
    %v337 = vunpack.c.l.b16 %v65
    %v338 = vunpack.c.h.b16 %v65
    %v339 = vunpack.c.l.b16 %v66
    %v340 = vunpack.c.h.b16 %v66
    %v341 = vunpack.c.l.b16 %v67
    %v342 = vunpack.c.h.b16 %v67
    %v343 = vunpack.c.l.b16 %v68
    %v344 = vunpack.c.h.b16 %v68
    %v345 = vunpack.c.l.b16 %v69
    %v346 = vunpack.c.h.b16 %v69
    %v347 = vunpack.c.l.b16 %v70
    %v348 = vunpack.c.h.b16 %v70
    %v349 = vunpack.c.l.b16 %v71
    %v350 = vunpack.c.h.b16 %v71
    %v351 = vunpack.c.l.b16 %v72
    %v352 = vunpack.c.h.b16 %v72
    %v353 = vunpack.c.l.b16 %v73
    %v354 = vunpack.c.h.b16 %v73
    %v355 = vunpack.c.l.b16 %v74
    %v356 = vunpack.c.h.b16 %v74
    %v357 = vunpack.c.l.b16 %v75
    %v358 = vunpack.c.h.b16 %v75
    %v359 = vunpack.c.l.b16 %v76
    %v360 = vunpack.c.h.b16 %v76
    %v361 = vunpack.c.l.b16 %v77
    %v362 = vunpack.c.h.b16 %v77
    %v363 = vunpack.c.l.b16 %v78
    %v364 = vunpack.c.h.b16 %v78
    %v365 = vunpack.c.l.b16 %v79
    %v366 = vunpack.c.h.b16 %v79
    %v367 = vunpack.c.l.b16 %v80
    %v368 = vunpack.c.h.b16 %v80
    %v369 = vunpack.c.l.b16 %v81
    %v370 = vunpack.c.h.b16 %v81
    %v371 = vunpack.c.l.b16 %v82
    %v372 = vunpack.c.h.b16 %v82
    %v373 = vunpack.c.l.b16 %v83
    %v374 = vunpack.c.h.b16 %v83
    %v375 = vunpack.c.l.b16 %v84
    %v376 = vunpack.c.h.b16 %v84
    %v377 = vunpack.c.l.b16 %v85
    %v378 = vunpack.c.h.b16 %v85
    %v379 = vunpack.c.l.b16 %v86
    %v380 = vunpack.c.h.b16 %v86
    %v381 = vunpack.c.l.b16 %v87
    %v382 = vunpack.c.h.b16 %v87
    %v383 = vunpack.c.l.b16 %v88
    %v384 = vunpack.c.h.b16 %v88
    %v385 = vunpack.c.l.b16 %v89
    %v386 = vunpack.c.h.b16 %v89
    %v387 = vunpack.c.l.b16 %v90
    %v388 = vunpack.c.h.b16 %v90
    %v389 = vunpack.c.l.b16 %v91
    %v390 = vunpack.c.h.b16 %v91
    %v391 = vunpack.c.l.b16 %v92
    %v392 = vunpack.c.h.b16 %v92
    %v393 = vunpack.c.l.b16 %v93
    %v394 = vunpack.c.h.b16 %v93
    %v395 = vunpack.c.l.b16 %v94
    %v396 = vunpack.c.h.b16 %v94
    %v397 = vunpack.c.l.b16 %v95
    %v398 = vunpack.c.h.b16 %v95
    %v399 = vunpack.c.l.b16 %v96
    %v400 = vunpack.c.h.b16 %v96
    %v401 = vunpack.c.l.b16 %v97
    %v402 = vunpack.c.h.b16 %v97
    %v403 = vunpack.c.l.b16 %v98
    %v404 = vunpack.c.h.b16 %v98
    %v405 = vunpack.c.l.b16 %v99
    %v406 = vunpack.c.h.b16 %v99
    %v407 = vunpack.c.l.b16 %v100
    %v408 = vunpack.c.h.b16 %v100
    %v409 = vunpack.c.l.b16 %v101
    %v410 = vunpack.c.h.b16 %v101
    %v411 = vunpack.c.l.b16 %v102
    %v412 = vunpack.c.h.b16 %v102
    %v413 = vunpack.c.l.b16 %v103
    %v414 = vunpack.c.h.b16 %v103
    %v415 = vunpack.c.l.b16 %v104
    %v416 = vunpack.c.h.b16 %v104
    %v417 = vunpack.c.l.b16 %v105
    %v418 = vunpack.c.h.b16 %v105
    %v419 = vunpack.c.l.b16 %v106
    %v420 = vunpack.c.h.b16 %v106
    %v421 = vunpack.c.l.b16 %v107
    %v422 = vunpack.c.h.b16 %v107
    %v423 = vunpack.c.l.b16 %v108
    %v424 = vunpack.c.h.b16 %v108
    %v425 = vunpack.c.l.b16 %v109
    %v426 = vunpack.c.h.b16 %v109
    %v427 = vunpack.c.l.b16 %v110
    %v428 = vunpack.c.h.b16 %v110
    %v429 = vunpack.c.l.b16 %v111
    %v430 = vunpack.c.h.b16 %v111
    %v431 = vunpack.c.l.b16 %v112
    %v432 = vunpack.c.h.b16 %v112
    %v433 = vunpack.c.l.b16 %v113
    %v434 = vunpack.c.h.b16 %v113
    %v435 = vunpack.c.l.b16 %v114
    %v436 = vunpack.c.h.b16 %v114
    %v437 = vunpack.c.l.b16 %v115
    %v438 = vunpack.c.h.b16 %v115
    %v439 = vunpack.c.l.b16 %v116
    %v440 = vunpack.c.h.b16 %v116
    %v441 = vunpack.c.l.b16 %v117
    %v442 = vunpack.c.h.b16 %v117
    %v443 = vunpack.c.l.b16 %v118
    %v444 = vunpack.c.h.b16 %v118
    %v445 = vunpack.c.l.b16 %v119
    %v446 = vunpack.c.h.b16 %v119
    %v447 = vunpack.c.l.b16 %v120
    %v448 = vunpack.c.h.b16 %v120
    %v449 = vunpack.c.l.b16 %v121
    %v450 = vunpack.c.h.b16 %v121
    %v451 = vunpack.c.l.b16 %v122
    %v452 = vunpack.c.h.b16 %v122
    %v453 = vunpack.c.l.b16 %v123
    %v454 = vunpack.c.h.b16 %v123
    %v455 = vunpack.c.l.b16 %v124
    %v456 = vunpack.c.h.b16 %v124
    %v457 = vunpack.c.l.b16 %v125
    %v458 = vunpack.c.h.b16 %v125
    %v459 = vunpack.c.l.b16 %v126
    %v460 = vunpack.c.h.b16 %v126
    %v461 = vunpack.c.l.b16 %v127
    %v462 = vunpack.c.h.b16 %v127
    %v463 = vunpack.c.l.b16 %v128
    %v464 = vunpack.c.h.b16 %v128
    %v465 = vunpack.c.l.b16 %v129
    %v466 = vunpack.c.h.b16 %v129
    %v467 = vunpack.c.l.b16 %v130
    %v468 = vunpack.c.h.b16 %v130
    %v469 = vunpack.c.l.b16 %v131
    %v470 = vunpack.c.h.b16 %v131
    %v471 = vunpack.c.l.b16 %v132
    %v472 = vunpack.c.h.b16 %v132
    %v473 = vunpack.c.l.b16 %v133
    %v474 = vunpack.c.h.b16 %v133
    %v475 = vunpack.c.l.b16 %v134
    %v476 = vunpack.c.h.b16 %v134
    %v477 = vunpack.c.l.b16 %v135
    %v478 = vunpack.c.h.b16 %v135
    %v479 = vunpack.c.l.b16 %v136
    %v480 = vunpack.c.h.b16 %v136
    %v481 = vunpack.c.l.b16 %v137
    %v482 = vunpack.c.h.b16 %v137
    %v483 = vunpack.c.l.b16 %v138
    %v484 = vunpack.c.h.b16 %v138
    %v485 = vunpack.c.l.b16 %v139
    %v486 = vunpack.c.h.b16 %v139
    %v487 = vunpack.c.l.b16 %v140
    %v488 = vunpack.c.h.b16 %v140
    %v489 = vunpack.c.l.b16 %v141
    %v490 = vunpack.c.h.b16 %v141
    %v491 = vunpack.c.l.b16 %v142
    %v492 = vunpack.c.h.b16 %v142
    %v493 = vunpack.c.l.b16 %v143
    %v494 = vunpack.c.h.b16 %v143
    %v495 = vunpack.c.l.b16 %v144
    %v496 = vunpack.c.h.b16 %v144
    %v497 = vunpack.c.l.b16 %v145
    %v498 = vunpack.c.h.b16 %v145
    %v499 = vunpack.c.l.b16 %v146
    %v500 = vunpack.c.h.b16 %v146
    %v501 = vunpack.c.l.b16 %v147
    %v502 = vunpack.c.h.b16 %v147
    %v503 = vunpack.c.l.b16 %v148
    %v504 = vunpack.c.h.b16 %v148
    %v505 = vunpack.c.l.b16 %v149
    %v506 = vunpack.c.h.b16 %v149
    %v507 = vunpack.c.l.b16 %v150
    %v508 = vunpack.c.h.b16 %v150
    %v509 = vunpack.c.l.b16 %v151
    %v510 = vunpack.c.h.b16 %v151
    %v511 = vunpack.c.l.b16 %v152
    %v512 = vunpack.c.h.b16 %v152
    %v513 = vunpack.c.l.b16 %v153
    %v514 = vunpack.c.h.b16 %v153
    %v515 = vunpack.c.l.b16 %v154
    %v516 = vunpack.c.h.b16 %v154
    %v517 = vunpack.c.l.b16 %v155
    %v518 = vunpack.c.h.b16 %v155
    %v519 = vunpack.c.l.b16 %v156
    %v520 = vunpack.c.h.b16 %v156
    %v521 = vunpack.c.l.b16 %v157
    %v522 = vunpack.c.h.b16 %v157
    %v523 = vunpack.c.l.b16 %v158
    %v524 = vunpack.c.h.b16 %v158
    %v525 = vunpack.c.l.b16 %v159
    %v526 = vunpack.c.h.b16 %v159
    %v527 = vunpack.c.l.b16 %v160
    %v528 = vunpack.c.h.b16 %v160
    %v529 = vunpack.c.l.b16 %v161
    %v530 = vunpack.c.h.b16 %v161
    %v531 = vunpack.c.l.b16 %v162
    %v532 = vunpack.c.h.b16 %v162
    %v533 = vunpack.c.l.b16 %v163
    %v534 = vunpack.c.h.b16 %v163
    %v535 = vunpack.c.l.b16 %v164
    %v536 = vunpack.c.h.b16 %v164
    %v537 = vunpack.c.l.b16 %v165
    %v538 = vunpack.c.h.b16 %v165
    %v539 = vunpack.c.l.b16 %v166
    %v540 = vunpack.c.h.b16 %v166
    %v541 = vunpack.c.l.b16 %v167
    %v542 = vunpack.c.h.b16 %v167
    %v543 = vunpack.c.l.b16 %v168
    %v544 = vunpack.c.h.b16 %v168
    %v545 = vunpack.c.l.b16 %v169
    %v546 = vunpack.c.h.b16 %v169
    %v547 = vunpack.c.l.b16 %v170
    %v548 = vunpack.c.h.b16 %v170
    %v549 = vunpack.c.l.b16 %v171
    %v550 = vunpack.c.h.b16 %v171
    %v551 = vunpack.c.l.b16 %v172
    %v552 = vunpack.c.h.b16 %v172
    %v553 = vunpack.c.l.b16 %v173
    %v554 = vunpack.c.h.b16 %v173
    %v555 = vunpack.c.l.b16 %v174
    %v556 = vunpack.c.h.b16 %v174
    %v557 = vunpack.c.l.b16 %v175
    %v558 = vunpack.c.h.b16 %v175
    %v559 = vunpack.c.l.b16 %v176
    %v560 = vunpack.c.h.b16 %v176
    %v561 = vunpack.c.l.b16 %v177
    %v562 = vunpack.c.h.b16 %v177
    %v563 = vunpack.c.l.b16 %v178
    %v564 = vunpack.c.h.b16 %v178
    %v565 = vunpack.c.l.b16 %v179
    %v566 = vunpack.c.h.b16 %v179
    %v567 = vunpack.c.l.b16 %v180
    %v568 = vunpack.c.h.b16 %v180
    %v569 = vunpack.c.l.b16 %v181
    %v570 = vunpack.c.h.b16 %v181
    %v571 = vunpack.c.l.b16 %v182
    %v572 = vunpack.c.h.b16 %v182
    %v573 = vunpack.c.l.b16 %v183
    %v574 = vunpack.c.h.b16 %v183
    %v575 = vunpack.c.l.b16 %v184
    %v576 = vunpack.c.h.b16 %v184
    %v577 = vunpack.c.l.b16 %v185
    %v578 = vunpack.c.h.b16 %v185
    %v579 = vunpack.c.l.b16 %v186
    %v580 = vunpack.c.h.b16 %v186
    %v581 = vunpack.c.l.b16 %v187
    %v582 = vunpack.c.h.b16 %v187
    %v583 = vunpack.c.l.b16 %v188
    %v584 = vunpack.c.h.b16 %v188
    %v585 = vpack.c.b16 %v331, %v329
    %v586 = vpack.c.b16 %v332, %v330
    %v587 = vpack.c.b16 %v335, %v333
    %v588 = vpack.c.b16 %v336, %v334
    %v589 = vpack.c.b16 %v339, %v337
    %v590 = vpack.c.b16 %v340, %v338
    %v591 = vpack.c.b16 %v343, %v341
    %v592 = vpack.c.b16 %v344, %v342
    %v593 = vpack.c.b16 %v347, %v345
    %v594 = vpack.c.b16 %v348, %v346
    %v595 = vpack.c.b16 %v351, %v349
    %v596 = vpack.c.b16 %v352, %v350
    %v597 = vpack.c.b16 %v355, %v353
    %v598 = vpack.c.b16 %v356, %v354
    %v599 = vpack.c.b16 %v359, %v357
    %v600 = vpack.c.b16 %v360, %v358
    %v601 = vpack.c.b16 %v363, %v361
    %v602 = vpack.c.b16 %v364, %v362
    %v603 = vpack.c.b16 %v367, %v365
    %v604 = vpack.c.b16 %v368, %v366
    %v605 = vpack.c.b16 %v371, %v369
    %v606 = vpack.c.b16 %v372, %v370
    %v607 = vpack.c.b16 %v375, %v373
    %v608 = vpack.c.b16 %v376, %v374
    %v609 = vpack.c.b16 %v379, %v377
    %v610 = vpack.c.b16 %v380, %v378
    %v611 = vpack.c.b16 %v383, %v381
    %v612 = vpack.c.b16 %v384, %v382
    %v613 = vpack.c.b16 %v387, %v385
    %v614 = vpack.c.b16 %v388, %v386
    %v615 = vpack.c.b16 %v391, %v389
    %v616 = vpack.c.b16 %v392, %v390
    %v617 = vpack.c.b16 %v395, %v393
    %v618 = vpack.c.b16 %v396, %v394
    %v619 = vpack.c.b16 %v399, %v397
    %v620 = vpack.c.b16 %v400, %v398
    %v621 = vpack.c.b16 %v403, %v401
    %v622 = vpack.c.b16 %v404, %v402
    %v623 = vpack.c.b16 %v407, %v405
    %v624 = vpack.c.b16 %v408, %v406
    %v625 = vpack.c.b16 %v411, %v409
    %v626 = vpack.c.b16 %v412, %v410
    %v627 = vpack.c.b16 %v415, %v413
    %v628 = vpack.c.b16 %v416, %v414
    %v629 = vpack.c.b16 %v419, %v417
    %v630 = vpack.c.b16 %v420, %v418
    %v631 = vpack.c.b16 %v423, %v421
    %v632 = vpack.c.b16 %v424, %v422
    %v633 = vpack.c.b16 %v427, %v425
    %v634 = vpack.c.b16 %v428, %v426
    %v635 = vpack.c.b16 %v431, %v429
    %v636 = vpack.c.b16 %v432, %v430
    %v637 = vpack.c.b16 %v435, %v433
    %v638 = vpack.c.b16 %v436, %v434
    %v639 = vpack.c.b16 %v439, %v437
    %v640 = vpack.c.b16 %v440, %v438
    %v641 = vpack.c.b16 %v443, %v441
    %v642 = vpack.c.b16 %v444, %v442
    %v643 = vpack.c.b16 %v447, %v445
    %v644 = vpack.c.b16 %v448, %v446
    %v645 = vpack.c.b16 %v451, %v449
    %v646 = vpack.c.b16 %v452, %v450
    %v647 = vpack.c.b16 %v455, %v453
    %v648 = vpack.c.b16 %v456, %v454
    %v649 = vpack.c.b16 %v459, %v457
    %v650 = vpack.c.b16 %v460, %v458
    %v651 = vpack.c.b16 %v463, %v461
    %v652 = vpack.c.b16 %v464, %v462
    %v653 = vpack.c.b16 %v467, %v465
    %v654 = vpack.c.b16 %v468, %v466
    %v655 = vpack.c.b16 %v471, %v469
    %v656 = vpack.c.b16 %v472, %v470
    %v657 = vpack.c.b16 %v475, %v473
    %v658 = vpack.c.b16 %v476, %v474
    %v659 = vpack.c.b16 %v479, %v477
    %v660 = vpack.c.b16 %v480, %v478
    %v661 = vpack.c.b16 %v483, %v481
    %v662 = vpack.c.b16 %v484, %v482
    %v663 = vpack.c.b16 %v487, %v485
    %v664 = vpack.c.b16 %v488, %v486
    %v665 = vpack.c.b16 %v491, %v489
    %v666 = vpack.c.b16 %v492, %v490
    %v667 = vpack.c.b16 %v495, %v493
    %v668 = vpack.c.b16 %v496, %v494
    %v669 = vpack.c.b16 %v499, %v497
    %v670 = vpack.c.b16 %v500, %v498
    %v671 = vpack.c.b16 %v503, %v501
    %v672 = vpack.c.b16 %v504, %v502
    %v673 = vpack.c.b16 %v507, %v505
    %v674 = vpack.c.b16 %v508, %v506
    %v675 = vpack.c.b16 %v511, %v509
    %v676 = vpack.c.b16 %v512, %v510
    %v677 = vpack.c.b16 %v515, %v513
    %v678 = vpack.c.b16 %v516, %v514
    %v679 = vpack.c.b16 %v519, %v517
    %v680 = vpack.c.b16 %v520, %v518
    %v681 = vpack.c.b16 %v523, %v521
    %v682 = vpack.c.b16 %v524, %v522
    %v683 = vpack.c.b16 %v527, %v525
    %v684 = vpack.c.b16 %v528, %v526
    %v685 = vpack.c.b16 %v531, %v529
    %v686 = vpack.c.b16 %v532, %v530
    %v687 = vpack.c.b16 %v535, %v533
    %v688 = vpack.c.b16 %v536, %v534
    %v689 = vpack.c.b16 %v539, %v537
    %v690 = vpack.c.b16 %v540, %v538
    %v691 = vpack.c.b16 %v543, %v541
    %v692 = vpack.c.b16 %v544, %v542
    %v693 = vpack.c.b16 %v547, %v545
    %v694 = vpack.c.b16 %v548, %v546
    %v695 = vpack.c.b16 %v551, %v549
    %v696 = vpack.c.b16 %v552, %v550
    %v697 = vpack.c.b16 %v555, %v553
    %v698 = vpack.c.b16 %v556, %v554
    %v699 = vpack.c.b16 %v559, %v557
    %v700 = vpack.c.b16 %v560, %v558
    %v701 = vpack.c.b16 %v563, %v561
    %v702 = vpack.c.b16 %v564, %v562
    %v703 = vpack.c.b16 %v567, %v565
    %v704 = vpack.c.b16 %v568, %v566
    %v705 = vpack.c.b16 %v571, %v569
    %v706 = vpack.c.b16 %v572, %v570
    %v707 = vpack.c.b16 %v575, %v573
    %v708 = vpack.c.b16 %v576, %v574
    %v709 = vpack.c.b16 %v579, %v577
    %v710 = vpack.c.b16 %v580, %v578
    %v711 = vpack.c.b16 %v583, %v581
    %v712 = vpack.c.b16 %v584, %v582
    %841 = vmatprep.subr.bf16.mxu0 %v586
    %842 = vmatpush1.bf16.msra.mxu0 %v585
    %843 = vmatprep.subr.bf16.mxu0 %v588
    %844 = vmatpush1.bf16.msra.mxu0 %v587
    %845 = vmatprep.subr.bf16.mxu0 %v590
    %846 = vmatpush1.bf16.msra.mxu0 %v589
    %847 = vmatprep.subr.bf16.mxu0 %v592
    %848 = vmatpush1.bf16.msra.mxu0 %v591
    %849 = vmatprep.subr.bf16.mxu0 %v594
    %850 = vmatpush1.bf16.msra.mxu0 %v593
    %851 = vmatprep.subr.bf16.mxu0 %v596
    %852 = vmatpush1.bf16.msra.mxu0 %v595
    %853 = vmatprep.subr.bf16.mxu0 %v598
    %854 = vmatpush1.bf16.msra.mxu0 %v597
    %855 = vmatprep.subr.bf16.mxu0 %v600
    %856 = vmatpush1.bf16.msra.mxu0 %v599
    %857 = vmatprep.subr.bf16.mxu0 %v602
    %858 = vmatpush1.bf16.msra.mxu0 %v601
    %859 = vmatprep.subr.bf16.mxu0 %v604
    %860 = vmatpush1.bf16.msra.mxu0 %v603
    %861 = vmatprep.subr.bf16.mxu0 %v606
    %862 = vmatpush1.bf16.msra.mxu0 %v605
    %863 = vmatprep.subr.bf16.mxu0 %v608
    %864 = vmatpush1.bf16.msra.mxu0 %v607
    %865 = vmatprep.subr.bf16.mxu0 %v610
    %866 = vmatpush1.bf16.msra.mxu0 %v609
    %867 = vmatprep.subr.bf16.mxu0 %v612
    %868 = vmatpush1.bf16.msra.mxu0 %v611
    %869 = vmatprep.subr.bf16.mxu0 %v614
    %870 = vmatpush1.bf16.msra.mxu0 %v613
    %871 = vmatprep.subr.bf16.mxu0 %v616
    %872 = vmatpush1.bf16.msra.mxu0 %v615
    %873 = vmatprep.mubr.bf16.mxu0 %v46
    %874 = vmatmul.mubr.bf16.gmra.mrb[0].mxu0 %v45
    %v875 = vpop.f32.mrb[0].mxu0
    %v876 = vadd.f32 %v194, %v875
    %v877 = vpop.f32.mrb[0].mxu0
    %v878 = vadd.f32 %v198, %v877
    %v879 = vpop.f32.mrb[0].mxu0
    %v880 = vadd.f32 %v194, %v879
    %v881 = vpop.f32.mrb[0].mxu0
    %v882 = vadd.f32 %v198, %v881
    %883 = vmatprep.mubr.bf16.mxu0 %v54
    %884 = vmatmul.mubr.bf16.gmra.mrb[0].mxu0 %v53
    %v885 = vpop.f32.mrb[0].mxu0
    %v886 = vadd.f32 %v194, %v885
    %v887 = vpop.f32.mrb[0].mxu0
    %v888 = vadd.f32 %v198, %v887
    %v889 = vpop.f32.mrb[0].mxu0
    %v890 = vadd.f32 %v194, %v889
    %v891 = vpop.f32.mrb[0].mxu0
    %v892 = vadd.f32 %v198, %v891
    %893 = vdwg.mxu0
    %894 = vmatprep.subr.bf16.mxu0 %v618
    %895 = vmatpush1.bf16.msra.mxu0 %v617
    %896 = vmatprep.subr.bf16.mxu0 %v620
    %897 = vmatpush1.bf16.msra.mxu0 %v619
    %898 = vmatprep.subr.bf16.mxu0 %v622
    %899 = vmatpush1.bf16.msra.mxu0 %v621
    %900 = vmatprep.subr.bf16.mxu0 %v624
    %901 = vmatpush1.bf16.msra.mxu0 %v623
    %902 = vmatprep.subr.bf16.mxu0 %v626
    %903 = vmatpush1.bf16.msra.mxu0 %v625
    %904 = vmatprep.subr.bf16.mxu0 %v628
    %905 = vmatpush1.bf16.msra.mxu0 %v627
    %906 = vmatprep.subr.bf16.mxu0 %v630
    %907 = vmatpush1.bf16.msra.mxu0 %v629
    %908 = vmatprep.subr.bf16.mxu0 %v632
    %909 = vmatpush1.bf16.msra.mxu0 %v631
    %910 = vmatprep.subr.bf16.mxu0 %v634
    %911 = vmatpush1.bf16.msra.mxu0 %v633
    %912 = vmatprep.subr.bf16.mxu0 %v636
    %913 = vmatpush1.bf16.msra.mxu0 %v635
    %914 = vmatprep.subr.bf16.mxu0 %v638
    %915 = vmatpush1.bf16.msra.mxu0 %v637
    %916 = vmatprep.subr.bf16.mxu0 %v640
    %917 = vmatpush1.bf16.msra.mxu0 %v639
    %918 = vmatprep.subr.bf16.mxu0 %v642
    %919 = vmatpush1.bf16.msra.mxu0 %v641
    %920 = vmatprep.subr.bf16.mxu0 %v644
    %921 = vmatpush1.bf16.msra.mxu0 %v643
    %922 = vmatprep.subr.bf16.mxu0 %v646
    %923 = vmatpush1.bf16.msra.mxu0 %v645
    %924 = vmatprep.subr.bf16.mxu0 %v648
    %925 = vmatpush1.bf16.msra.mxu0 %v647
    %926 = vmatprep.mubr.bf16.mxu0 %v48
    %927 = vmatmul.mubr.bf16.gmra.mrb[0].mxu0 %v47
    %v928 = vpop.f32.mrb[0].mxu0
    %v929 = vadd.f32 %v876, %v928
    %v930 = vpop.f32.mrb[0].mxu0
    %v931 = vadd.f32 %v878, %v930
    %v932 = vpop.f32.mrb[0].mxu0
    %v933 = vadd.f32 %v880, %v932
    %v934 = vpop.f32.mrb[0].mxu0
    %v935 = vadd.f32 %v882, %v934
    %936 = vmatprep.mubr.bf16.mxu0 %v56
    %937 = vmatmul.mubr.bf16.gmra.mrb[0].mxu0 %v55
    %v938 = vpop.f32.mrb[0].mxu0
    %v939 = vadd.f32 %v886, %v938
    %v940 = vpop.f32.mrb[0].mxu0
    %v941 = vadd.f32 %v888, %v940
    %v942 = vpop.f32.mrb[0].mxu0
    %v943 = vadd.f32 %v890, %v942
    %v944 = vpop.f32.mrb[0].mxu0
    %v945 = vadd.f32 %v892, %v944
    %946 = vdwg.mxu0
    %947 = vmatprep.subr.bf16.mxu0 %v650
    %948 = vmatpush1.bf16.msra.mxu0 %v649
    %949 = vmatprep.subr.bf16.mxu0 %v652
    %950 = vmatpush1.bf16.msra.mxu0 %v651
    %951 = vmatprep.subr.bf16.mxu0 %v654
    %952 = vmatpush1.bf16.msra.mxu0 %v653
    %953 = vmatprep.subr.bf16.mxu0 %v656
    %954 = vmatpush1.bf16.msra.mxu0 %v655
    %955 = vmatprep.subr.bf16.mxu0 %v658
    %956 = vmatpush1.bf16.msra.mxu0 %v657
    %957 = vmatprep.subr.bf16.mxu0 %v660
    %958 = vmatpush1.bf16.msra.mxu0 %v659
    %959 = vmatprep.subr.bf16.mxu0 %v662
    %960 = vmatpush1.bf16.msra.mxu0 %v661
    %961 = vmatprep.subr.bf16.mxu0 %v664
    %962 = vmatpush1.bf16.msra.mxu0 %v663
    %963 = vmatprep.subr.bf16.mxu0 %v666
    %964 = vmatpush1.bf16.msra.mxu0 %v665
    %965 = vmatprep.subr.bf16.mxu0 %v668
    %966 = vmatpush1.bf16.msra.mxu0 %v667
    %967 = vmatprep.subr.bf16.mxu0 %v670
    %968 = vmatpush1.bf16.msra.mxu0 %v669
    %969 = vmatprep.subr.bf16.mxu0 %v672
    %970 = vmatpush1.bf16.msra.mxu0 %v671
    %971 = vmatprep.subr.bf16.mxu0 %v674
    %972 = vmatpush1.bf16.msra.mxu0 %v673
    %973 = vmatprep.subr.bf16.mxu0 %v676
    %974 = vmatpush1.bf16.msra.mxu0 %v675
    %975 = vmatprep.subr.bf16.mxu0 %v678
    %976 = vmatpush1.bf16.msra.mxu0 %v677
    %977 = vmatprep.subr.bf16.mxu0 %v680
    %978 = vmatpush1.bf16.msra.mxu0 %v679
    %979 = vmatprep.mubr.bf16.mxu0 %v50
    %980 = vmatmul.mubr.bf16.gmra.mrb[0].mxu0 %v49
    %v981 = vpop.f32.mrb[0].mxu0
    %v982 = vadd.f32 %v929, %v981
    %v983 = vpop.f32.mrb[0].mxu0
    %v984 = vadd.f32 %v931, %v983
    %v985 = vpop.f32.mrb[0].mxu0
    %v986 = vadd.f32 %v933, %v985
    %v987 = vpop.f32.mrb[0].mxu0
    %v988 = vadd.f32 %v935, %v987
    %989 = vmatprep.mubr.bf16.mxu0 %v58
    %990 = vmatmul.mubr.bf16.gmra.mrb[0].mxu0 %v57
    %v991 = vpop.f32.mrb[0].mxu0
    %v992 = vadd.f32 %v939, %v991
    %v993 = vpop.f32.mrb[0].mxu0
    %v994 = vadd.f32 %v941, %v993
    %v995 = vpop.f32.mrb[0].mxu0
    %v996 = vadd.f32 %v943, %v995
    %v997 = vpop.f32.mrb[0].mxu0
    %v998 = vadd.f32 %v945, %v997
    %999 = vdwg.mxu0
    %1000 = vmatprep.subr.bf16.mxu0 %v682
    %1001 = vmatpush1.bf16.msra.mxu0 %v681
    %1002 = vmatprep.subr.bf16.mxu0 %v684
    %1003 = vmatpush1.bf16.msra.mxu0 %v683
    %1004 = vmatprep.subr.bf16.mxu0 %v686
    %1005 = vmatpush1.bf16.msra.mxu0 %v685
    %1006 = vmatprep.subr.bf16.mxu0 %v688
    %1007 = vmatpush1.bf16.msra.mxu0 %v687
    %1008 = vmatprep.subr.bf16.mxu0 %v690
    %1009 = vmatpush1.bf16.msra.mxu0 %v689
    %1010 = vmatprep.subr.bf16.mxu0 %v692
    %1011 = vmatpush1.bf16.msra.mxu0 %v691
    %1012 = vmatprep.subr.bf16.mxu0 %v694
    %1013 = vmatpush1.bf16.msra.mxu0 %v693
    %1014 = vmatprep.subr.bf16.mxu0 %v696
    %1015 = vmatpush1.bf16.msra.mxu0 %v695
    %1016 = vmatprep.subr.bf16.mxu0 %v698
    %1017 = vmatpush1.bf16.msra.mxu0 %v697
    %1018 = vmatprep.subr.bf16.mxu0 %v700
    %1019 = vmatpush1.bf16.msra.mxu0 %v699
    %1020 = vmatprep.subr.bf16.mxu0 %v702
    %1021 = vmatpush1.bf16.msra.mxu0 %v701
    %1022 = vmatprep.subr.bf16.mxu0 %v704
    %1023 = vmatpush1.bf16.msra.mxu0 %v703
    %1024 = vmatprep.subr.bf16.mxu0 %v706
    %1025 = vmatpush1.bf16.msra.mxu0 %v705
    %1026 = vmatprep.subr.bf16.mxu0 %v708
    %1027 = vmatpush1.bf16.msra.mxu0 %v707
    %1028 = vmatprep.subr.bf16.mxu0 %v710
    %1029 = vmatpush1.bf16.msra.mxu0 %v709
    %1030 = vmatprep.subr.bf16.mxu0 %v712
    %1031 = vmatpush1.bf16.msra.mxu0 %v711
    %1032 = vmatprep.mubr.bf16.mxu0 %v52
    %1033 = vmatmul.mubr.bf16.gmra.mrb[0].mxu0 %v51
    %v1034 = vpop.f32.mrb[0].mxu0
    %v1035 = vadd.f32 %v982, %v1034
    %v1036 = vpop.f32.mrb[0].mxu0
    %v1037 = vadd.f32 %v984, %v1036
    %v1038 = vpop.f32.mrb[0].mxu0
    %v1039 = vadd.f32 %v986, %v1038
    %v1040 = vpop.f32.mrb[0].mxu0
    %v1041 = vadd.f32 %v988, %v1040
    %1042 = vmatprep.mubr.bf16.mxu0 %v60
    %1043 = vmatmul.mubr.bf16.gmra.mrb[0].mxu0 %v59
    %v1044 = vpop.f32.mrb[0].mxu0
    %v1045 = vadd.f32 %v992, %v1044
    %v1046 = vpop.f32.mrb[0].mxu0
    %v1047 = vadd.f32 %v994, %v1046
    %v1048 = vpop.f32.mrb[0].mxu0
    %v1049 = vadd.f32 %v996, %v1048
    %v1050 = vpop.f32.mrb[0].mxu0
    %v1051 = vadd.f32 %v998, %v1050
    %1052 = vdwg.mxu0
    %1053 = vst [vmem:[%s5] sm:$0xff] %v1035
    %1054 = vst [vmem:[%s5 + $0x8] sm:$0xff] %v1037
    %1055 = vst [vmem:[%s5 + $0x10] sm:$0xff] %v1039
    %1056 = vst [vmem:[%s5 + $0x18] sm:$0xff] %v1041
    %1057 = vst [vmem:[%s5 + $0x20] sm:$0xff] %v1045
    %1058 = vst [vmem:[%s5 + $0x28] sm:$0xff] %v1047
    %1059 = vst [vmem:[%s5 + $0x30] sm:$0xff] %v1049
    %1060 = vst [vmem:[%s5 + $0x38] sm:$0xff] %v1051
    %v1061 = vlaneseq
    %v1062 = vand.u32 %v1061, 127
    %v1063 = vld [vmem:[%s3] sm:$0xff]
    %v1064 = vld [vmem:[%s3 + $0x8] sm:$0xff]
    %v1065 = vld [vmem:[%s3 + $0x10] sm:$0xff]
    %v1066 = vld [vmem:[%s3 + $0x18] sm:$0xff]
    %1067 = vset.pattern.permute.xlu0 0
    %1068 = vperm.xlu0 %1067, %v1063
    %v1069 = vpop.permute.xlu0 %1068
    %1070 = vset.pattern.permute.xlu0 0
    %1071 = vperm.xlu0 %1070, %v1064
    %v1072 = vpop.permute.xlu0 %1071
    %1073 = vset.pattern.permute.xlu0 0
    %1074 = vperm.xlu0 %1073, %v1065
    %v1075 = vpop.permute.xlu0 %1074
    %1076 = vset.pattern.permute.xlu0 0
    %1077 = vperm.xlu0 %1076, %v1066
    %v1078 = vpop.permute.xlu0 %1077
    %vm1079 = vcmp.lt.s32.totalorder %v1062, %v1069
    %vm1080 = vcmp.lt.s32.totalorder %v1062, %v1072
    %vm1081 = vcmp.lt.s32.totalorder %v1062, %v1075
    %vm1082 = vcmp.lt.s32.totalorder %v1062, %v1078
    %v1083 = vsel %vm1079, 1, 0
    %v1084 = vsel %vm1080, 1, 0
    %v1085 = vsel %vm1081, 1, 0
    %v1086 = vsel %vm1082, 1, 0
    %v1087 = vcvt.s32.f32 %v1083
    %v1088 = vcvt.s32.f32 %v1084
    %v1089 = vcvt.s32.f32 %v1085
    %v1090 = vcvt.s32.f32 %v1086
    %v1091 = vpack.c.bf16 %v1088, %v1087
    %v1092 = vpack.c.bf16 %v1090, %v1089
    %v1095 = vunpack.c.l.b16 %v1091
    %v1096 = vunpack.c.h.b16 %v1091
    %v1097 = vunpack.c.l.b16 %v1092
    %v1098 = vunpack.c.h.b16 %v1092
    %v1099 = vpack.c.b16 %v1095, %v1095
    %v1100 = vpack.c.b16 %v1096, %v1096
    %v1101 = vpack.c.b16 %v1097, %v1097
    %v1102 = vpack.c.b16 %v1098, %v1098
    %1107 = vst [vmem:[%s6] sm:$0xf] %v1099
    %1108 = vst [vmem:[%s6 + $0x4] sm:$0xf] %v1100
    %1109 = vst [vmem:[%s6 + $0x8] sm:$0xf] %v1101
    %1110 = vst [vmem:[%s6 + $0xc] sm:$0xf] %v1102
    %v1111 = vld [vmem:[%s4] sm:$0xff]
    %v1112 = vld [vmem:[%s4 + $0x8] sm:$0xff]
    %v1113 = vld [vmem:[%s4 + $0x10] sm:$0xff]
    %v1114 = vld [vmem:[%s4 + $0x18] sm:$0xff]
    %1115 = vset.pattern.permute.xlu0 0
    %1116 = vperm.xlu0 %1115, %v1111
    %v1117 = vpop.permute.xlu0 %1116
    %1118 = vset.pattern.permute.xlu0 0
    %1119 = vperm.xlu0 %1118, %v1112
    %v1120 = vpop.permute.xlu0 %1119
    %1121 = vset.pattern.permute.xlu0 0
    %1122 = vperm.xlu0 %1121, %v1113
    %v1123 = vpop.permute.xlu0 %1122
    %1124 = vset.pattern.permute.xlu0 0
    %1125 = vperm.xlu0 %1124, %v1114
    %v1126 = vpop.permute.xlu0 %1125
    %vm1127 = vcmp.lt.s32.totalorder %v1062, %v1117
    %vm1128 = vcmp.lt.s32.totalorder %v1062, %v1120
    %vm1129 = vcmp.lt.s32.totalorder %v1062, %v1123
    %vm1130 = vcmp.lt.s32.totalorder %v1062, %v1126
    %v1131 = vsel %vm1127, 1, 0
    %v1132 = vsel %vm1128, 1, 0
    %v1133 = vsel %vm1129, 1, 0
    %v1134 = vsel %vm1130, 1, 0
    %v1135 = vcvt.s32.f32 %v1131
    %v1136 = vcvt.s32.f32 %v1132
    %v1137 = vcvt.s32.f32 %v1133
    %v1138 = vcvt.s32.f32 %v1134
    %v1139 = vpack.c.bf16 %v1136, %v1135
    %v1140 = vpack.c.bf16 %v1138, %v1137
    %v1143 = vunpack.c.l.b16 %v1139
    %v1144 = vunpack.c.h.b16 %v1139
    %v1145 = vunpack.c.l.b16 %v1140
    %v1146 = vunpack.c.h.b16 %v1140
    %v1147 = vpack.c.b16 %v1143, %v1143
    %v1148 = vpack.c.b16 %v1144, %v1144
    %v1149 = vpack.c.b16 %v1145, %v1145
    %v1150 = vpack.c.b16 %v1146, %v1146
    %1155 = vst [vmem:[%s7] sm:$0xf] %v1147
    %1156 = vst [vmem:[%s7 + $0x4] sm:$0xf] %v1148
    %1157 = vst [vmem:[%s7 + $0x8] sm:$0xf] %v1149
    %1158 = vst [vmem:[%s7 + $0xc] sm:$0xf] %v1150
    // Predicated region
    $region26: #{predictor_forward.1} parent=1 // pred_check
      _
    $region27: #{predictor_forward.1} parent=1 // pred_check_branch
      %1160 = sbr.rel (0) target = $region29
    $region28: #{predictor_forward.1} parent=1 // pred_region
      _
    $region29: #{predictor_forward.1} parent=1 // pred_fallthru
      _
    // Predicated region
    $region30: #{predictor_forward.1} parent=1 // pred_check
      _
    $region31: #{predictor_forward.1} parent=1 // pred_check_branch
      %1162 = sbr.rel (0) target = $region33
    $region32: #{predictor_forward.1} parent=1 // pred_region
      _
    $region33: #{predictor_forward.1} parent=1 // pred_fallthru
      _
    // Predicated region
    $region34: #{predictor_forward.1} parent=1 // pred_check
      _
    $region35: #{predictor_forward.1} parent=1 // pred_check_branch
      %1164 = sbr.rel (0) target = $region37
    $region36: #{predictor_forward.1} parent=1 // pred_region
      _
    $region37: #{predictor_forward.1} parent=1 // pred_fallthru
      _
    // Predicated region
    $region38: #{predictor_forward.1} parent=1 // pred_check
      _
    $region39: #{predictor_forward.1} parent=1 // pred_check_branch
      %1166 = sbr.rel (0) target = $region41
    $region40: #{predictor_forward.1} parent=1 // pred_region
      _
    $region41: #{predictor_forward.1} parent=1 // pred_fallthru
      _
    // Predicated region
    $region42: #{predictor_forward.1} parent=1 // pred_check
      _
    $region43: #{predictor_forward.1} parent=1 // pred_check_branch
      %1168 = sbr.rel (0) target = $region45
    $region44: #{predictor_forward.1} parent=1 // pred_region
      _
    $region45: #{predictor_forward.1} parent=1 // pred_fallthru
      _
    // Predicated region
    $region46: #{predictor_forward.1} parent=1 // pred_check
      _
    $region47: #{predictor_forward.1} parent=1 // pred_check_branch
      %1170 = sbr.rel (0) target = $region49
    $region48: #{predictor_forward.1} parent=1 // pred_region
      _
    $region49: #{predictor_forward.1} parent=1 // pred_fallthru
      _
    %1171 = vsyncpa [#allocation3], 1

</llo_original>
